<compile_context>
chip_gen: v5e
topology: v5e:2x2
jax: 0.10.0
libtpu: 0.0.40
codegen_flags: <defaults>
</compile_context>

<pallas_src>
import jax
import jax.numpy as jnp
from jax.experimental import pallas as pl
from jax.experimental.pallas import tpu as pltpu


def _round_up(n: int, m: int) -> int:
    return (n + m - 1) // m * m


def _mlp_kernel(x_ref, w1_ref, b1_ref, w2_ref, b2_ref, o_ref):
    # fc1: (TM, in) @ (in, H_pad) on the MXU, f32 accumulator.
    h = jnp.dot(x_ref[...], w1_ref[...], preferred_element_type=jnp.float32)
    h = jnp.maximum(h + b1_ref[...], 0.0)            # bias + ReLU in f32 (VPU)
    # fc2: cast activations back to bf16 so the second matmul is a single-pass
    # bf16 MXU op; accumulate in f32, then one VPU bias add.
    out = jnp.dot(h.astype(w2_ref.dtype), w2_ref[...],
                  preferred_element_type=jnp.float32)
    o_ref[...] = out + b2_ref[...]                    # lane-dense, unmasked store


def prepare_params(w1, b1, w2, b2):
    """One-time parameter prep: K-major transpose, bf16 cast, lane-pad N dims.

    PyTorch layouts in: w1 (hidden, in), b1 (hidden,), w2 (classes, hidden),
    b2 (classes,).  Zero-padding hidden/classes is exact for the real outputs
    (relu(0 + 0) = 0 contributes nothing to fc2).  The K dim (in) is NOT padded.
    """
    hid, in_f = w1.shape
    nc = w2.shape[0]
    ph = _round_up(hid, 128)
    pc = _round_up(nc, 128)

    w1t = jnp.zeros((in_f, ph), jnp.bfloat16).at[:, :hid].set(
        w1.T.astype(jnp.bfloat16))
    b1p = jnp.zeros((1, ph), jnp.float32).at[0, :hid].set(b1.astype(jnp.float32))
    w2t = jnp.zeros((ph, pc), jnp.bfloat16).at[:hid, :nc].set(
        w2.T.astype(jnp.bfloat16))
    b2p = jnp.zeros((1, pc), jnp.float32).at[0, :nc].set(b2.astype(jnp.float32))
    return (w1t, b1p, w2t, b2p), (in_f, hid, nc)


def _pick_tm(batch: int) -> int:
    """Batch tile size: full-dim block for small batches, >=256 rows otherwise."""
    if batch <= 512:
        return batch                       # single tile; full-array block dims
    for tm in (512, 256, 128):             # >=256 preferred on v6e/v7x MXU
        if batch % tm == 0:
            return tm
    return 256                             # ragged tail handled by Pallas masking


def neural_net_forward(x, padded_params, dims):
    """Hot path: cast x (no padding), run the fused MLP kernel, slice logits."""
    w1t, b1p, w2t, b2p = padded_params
    in_f, hid, nc = dims
    batch = x.shape[0]
    ph, pc = w2t.shape

    x = x.astype(jnp.bfloat16)             # cast only; no padded-x buffer
    tm = _pick_tm(batch)
    grid = (pl.cdiv(batch, tm),)

    flops = 2 * batch * (in_f * hid + hid * nc)
    bytes_accessed = (2 * batch * in_f + 2 * in_f * ph + 4 * ph
                      + 2 * ph * pc + 4 * pc + 4 * batch * pc)

    out_p = pl.pallas_call(
        _mlp_kernel,
        out_shape=jax.ShapeDtypeStruct((batch, pc), jnp.float32),
        grid_spec=pltpu.PrefetchScalarGridSpec(
            num_scalar_prefetch=0,
            grid=grid,
            in_specs=[
                pl.BlockSpec((tm, in_f), lambda i: (i, 0)),    # x: batch-tiled
                pl.BlockSpec((in_f, ph), lambda i: (0, 0)),    # w1t: VMEM-resident
                pl.BlockSpec((1, ph), lambda i: (0, 0)),       # b1:  VMEM-resident
                pl.BlockSpec((ph, pc), lambda i: (0, 0)),      # w2t: VMEM-resident
                pl.BlockSpec((1, pc), lambda i: (0, 0)),       # b2:  VMEM-resident
            ],
            out_specs=pl.BlockSpec((tm, pc), lambda i: (i, 0)),
        ),
        compiler_params=pltpu.CompilerParams(
            dimension_semantics=("parallel",)),
        cost_estimate=pl.CostEstimate(
            flops=flops, transcendentals=0, bytes_accessed=bytes_accessed),
    )(x, w1t, b1p, w2t, b2p)

    return out_p[:, :nc]


if __name__ == "__main__":
    # Small shapes implied by the module: flat features in, flat logits out.
    batch = 2
    input_size = 32
    hidden_size = 32
    num_classes = 8

    key = jax.random.PRNGKey(0)
    kx, k1, kb1, k2, kb2 = jax.random.split(key, 5)

    x = jax.random.normal(kx, (batch, input_size), dtype=jnp.float32)
    # PyTorch Linear layouts: weight (out, in), bias (out,)
    w1 = jax.random.normal(k1, (hidden_size, input_size), dtype=jnp.float32) * 0.1
    b1 = jax.random.normal(kb1, (hidden_size,), dtype=jnp.float32) * 0.1
    w2 = jax.random.normal(k2, (num_classes, hidden_size), dtype=jnp.float32) * 0.1
    b2 = jax.random.normal(kb2, (num_classes,), dtype=jnp.float32) * 0.1

    # One-time parameter prep (out of the hot path), then a jitted forward.
    padded_params, dims = prepare_params(w1, b1, w2, b2)
    fwd = jax.jit(lambda xx: neural_net_forward(xx, padded_params, dims))

    out = fwd(x)
    jax.block_until_ready(out)

    # Reference check in plain f32 JAX (same math as the PyTorch module).
    # bf16 matmul inputs (f32 accumulation) -> loosened tolerance vs. f32 ref.
    ref = jnp.maximum(x @ w1.T + b1, 0.0) @ w2.T + b2
    assert out.shape == (batch, num_classes)
    assert jnp.allclose(out, ref, atol=5e-2, rtol=5e-2), float(
        jnp.max(jnp.abs(out - ref)))

    print("KERNEL_OK")
</pallas_src>

<mosaic_0001>
module attributes {stable_mosaic.version = 11 : i64} {
  func.func @_mlp_kernel(%arg0: i32, %arg1: memref<2x32xbf16, #tpu.memory_space<vmem>>, %arg2: memref<32x128xbf16, #tpu.memory_space<vmem>>, %arg3: memref<1x128xf32, #tpu.memory_space<vmem>>, %arg4: memref<128x128xbf16, #tpu.memory_space<vmem>>, %arg5: memref<1x128xf32, #tpu.memory_space<vmem>>, %arg6: memref<2x128xf32, #tpu.memory_space<vmem>>) attributes {dimension_semantics = [#tpu.dimension_semantics<parallel>], iteration_bounds = array<i64: 1>, scalar_prefetch = 0 : i64, scratch_operands = 0 : i64, tpu.core_type = #tpu.core_type<tc>, window_params = [{transform_indices = @transform_0, window_bounds = array<i64: 2, 32>}, {pipeline_mode = #tpu.pipeline_mode<synchronous>, transform_indices = @transform_1, window_bounds = array<i64: 32, 128>}, {pipeline_mode = #tpu.pipeline_mode<synchronous>, transform_indices = @transform_2, window_bounds = array<i64: 1, 128>}, {pipeline_mode = #tpu.pipeline_mode<synchronous>, transform_indices = @transform_3, window_bounds = array<i64: 128, 128>}, {pipeline_mode = #tpu.pipeline_mode<synchronous>, transform_indices = @transform_4, window_bounds = array<i64: 1, 128>}, {transform_indices = @transform_5, window_bounds = array<i64: 2, 128>}]} {
    %c0 = arith.constant 0 : index
    %c0_0 = arith.constant 0 : index
    %0 = vector.load %arg1[%c0, %c0_0] : memref<2x32xbf16, #tpu.memory_space<vmem>>, vector<2x32xbf16>
    %c0_1 = arith.constant 0 : index
    %c0_2 = arith.constant 0 : index
    %1 = vector.load %arg2[%c0_1, %c0_2] : memref<32x128xbf16, #tpu.memory_space<vmem>>, vector<32x128xbf16>
    %cst = arith.constant dense<0.000000e+00> : vector<2x128xf32>
    %2 = tpu.matmul %0, %1, %cst {dimension_numbers = #tpu.dot_dimension_numbers<[1], [0], [0], [1], [0, 0, 1, 1], [], []>} : vector<2x32xbf16>, vector<32x128xbf16>, vector<2x128xf32> -> vector<2x128xf32>
    %c0_3 = arith.constant 0 : index
    %c0_4 = arith.constant 0 : index
    %3 = vector.load %arg3[%c0_3, %c0_4] : memref<1x128xf32, #tpu.memory_space<vmem>>, vector<1x128xf32>
    %4 = vector.broadcast %3 : vector<1x128xf32> to vector<2x128xf32>
    %5 = arith.addf %2, %4 : vector<2x128xf32>
    %cst_5 = arith.constant 0.000000e+00 : f32
    %6 = vector.broadcast %cst_5 : f32 to vector<2x128xf32>
    %7 = arith.maximumf %5, %6 : vector<2x128xf32>
    %8 = arith.truncf %7 : vector<2x128xf32> to vector<2x128xbf16>
    %c0_6 = arith.constant 0 : index
    %c0_7 = arith.constant 0 : index
    %9 = vector.load %arg4[%c0_6, %c0_7] : memref<128x128xbf16, #tpu.memory_space<vmem>>, vector<128x128xbf16>
    %cst_8 = arith.constant dense<0.000000e+00> : vector<2x128xf32>
    %10 = tpu.matmul %8, %9, %cst_8 {dimension_numbers = #tpu.dot_dimension_numbers<[1], [0], [0], [1], [0, 0, 1, 1], [], []>} : vector<2x128xbf16>, vector<128x128xbf16>, vector<2x128xf32> -> vector<2x128xf32>
    %c0_9 = arith.constant 0 : index
    %c0_10 = arith.constant 0 : index
    %11 = vector.load %arg5[%c0_9, %c0_10] : memref<1x128xf32, #tpu.memory_space<vmem>>, vector<1x128xf32>
    %12 = vector.broadcast %11 : vector<1x128xf32> to vector<2x128xf32>
    %13 = arith.addf %10, %12 : vector<2x128xf32>
    %c0_11 = arith.constant 0 : index
    %c0_12 = arith.constant 0 : index
    %14 = vector.load %arg6[%c0_11, %c0_12] : memref<2x128xf32, #tpu.memory_space<vmem>>, vector<2x128xf32>
    tpu.vector_store %arg6[%c0_11, %c0_12], %13 {strides = array<i32>} : memref<2x128xf32, #tpu.memory_space<vmem>>, vector<2x128xf32>,
    return
  }
  func.func @transform_0(%arg0: i32) -> (i32, i32) {
    %c0_i32 = arith.constant 0 : i32
    %c0_i32_0 = arith.constant 0 : i32
    return %arg0, %c0_i32 : i32, i32
  }
  func.func @transform_1(%arg0: i32) -> (i32, i32) {
    %c0_i32 = arith.constant 0 : i32
    %c0_i32_0 = arith.constant 0 : i32
    %c0_i32_1 = arith.constant 0 : i32
    return %c0_i32, %c0_i32_0 : i32, i32
  }
  func.func @transform_2(%arg0: i32) -> (i32, i32) {
    %c0_i32 = arith.constant 0 : i32
    %c0_i32_0 = arith.constant 0 : i32
    %c0_i32_1 = arith.constant 0 : i32
    return %c0_i32, %c0_i32_0 : i32, i32
  }
  func.func @transform_3(%arg0: i32) -> (i32, i32) {
    %c0_i32 = arith.constant 0 : i32
    %c0_i32_0 = arith.constant 0 : i32
    %c0_i32_1 = arith.constant 0 : i32
    return %c0_i32, %c0_i32_0 : i32, i32
  }
  func.func @transform_4(%arg0: i32) -> (i32, i32) {
    %c0_i32 = arith.constant 0 : i32
    %c0_i32_0 = arith.constant 0 : i32
    %c0_i32_1 = arith.constant 0 : i32
    return %c0_i32, %c0_i32_0 : i32, i32
  }
  func.func @transform_5(%arg0: i32) -> (i32, i32) {
    %c0_i32 = arith.constant 0 : i32
    %c0_i32_0 = arith.constant 0 : i32
    return %arg0, %c0_i32 : i32, i32
  }
}

</mosaic_0001>

<llo_original>
// kernel: _lambda_.1
$region0: #{_lambda_.1}
  #allocation0 [shape = 'u32[]', space=smem, size = 0x4, offset = 0x4, fixed_abs, tag = 'smem constant byte address 0x4 - core index']
  #allocation1 [shape = 'u32[72,128]{1,0:T(1,128)}', space=vmem, size = 0x9000, scoped, tag = 'internal scratch']
  %s0 = inlined_call_operand.vmem [shape: bf16[2,32], index: 0, kind: input, shape index: {}]
  %s1 = inlined_call_operand.hbm [shape: bf16[32,128], index: 1, kind: input, shape index: {}]
  %s2 = inlined_call_operand.vmem [shape: f32[1,128], index: 2, kind: input, shape index: {}]
  %s3 = inlined_call_operand.hbm [shape: bf16[128,128], index: 3, kind: input, shape index: {}]
  %s4 = inlined_call_operand.vmem [shape: f32[1,128], index: 4, kind: input, shape index: {}]
  %s5 = inlined_call_operand.hbm [shape: f32[2,128], index: 5, kind: output, shape index: {}]
  %s6 = sld [smem:[#allocation0]]
  $region38: #{_lambda_.1} parent=0
    _
  %s8 = ssub.s32 1, %s6
  %s9 = scalar_select 0, %s8, %s6
  $region1: #{_lambda_.1} parent=0
    #allocation2 [shape = 'u8[8192]{0}', space=vmem, size = 0x2000, scoped, tag = 'input window, operand 1, single buffered']
    #allocation3 [shape = 's32[1]{0}', space=sflag, size = 0x4, scoped, tag = 'scoped memory for _lambda_.1']
    #allocation4 [shape = 's32[1]{0}', space=sflag, size = 0x4, scoped, tag = 'scoped memory for _lambda_.1']
    #allocation5 [shape = 'u8[32768]{0}', space=vmem, size = 0x8000, scoped, tag = 'input window, operand 3, single buffered']
    #allocation6 [shape = 's32[1]{0}', space=sflag, size = 0x4, scoped, tag = 'scoped memory for _lambda_.1']
    #allocation7 [shape = 'u8[1024]{0}', space=vmem, size = 0x400, scoped, tag = 'output window, operand 0, single buffered']
    %10 = vsyncpa [#allocation3], 0
    %11 = vsyncpa [#allocation6], 0
    %12 = vsyncpa [#allocation4], 0
    // Predicated region
    $region2: #{_lambda_.1} parent=1 // pred_check
      _
    $region3: #{_lambda_.1} parent=1 // pred_check_branch
      %14 = sbr.rel (0) target = $region5
    $region4: #{_lambda_.1} parent=1 // pred_region
      _
    $region5: #{_lambda_.1} parent=1 // pred_fallthru
      _
    // Predicated region
    $region6: #{_lambda_.1} parent=1 // pred_check
      _
    $region7: #{_lambda_.1} parent=1 // pred_check_branch
      %16 = sbr.rel (0) target = $region9
    $region8: #{_lambda_.1} parent=1 // pred_region
      %18 = vsyncadd [#allocation3], 0
      %s19 = sshll.u32 %s1, 4
      %s20 = int_to_ptr.hbm [resolvable:$true] %s19
      %s21 = sshll.u32 [#allocation2], 4
      %s22 = int_to_ptr.vmem [resolvable:$true] %s21
      %27 = dma.hbm_to_vmem [thread:$0]  %s20, 256, %s22, [#allocation3], 64, 64, 4
    $region9: #{_lambda_.1} parent=1 // pred_fallthru
      _
    // Predicated region
    $region10: #{_lambda_.1} parent=1 // pred_check
      _
    $region11: #{_lambda_.1} parent=1 // pred_check_branch
      %29 = sbr.rel (0) target = $region13
    $region12: #{_lambda_.1} parent=1 // pred_region
      _
    $region13: #{_lambda_.1} parent=1 // pred_fallthru
      _
    // Predicated region
    $region14: #{_lambda_.1} parent=1 // pred_check
      _
    $region15: #{_lambda_.1} parent=1 // pred_check_branch
      %31 = sbr.rel (0) target = $region17
    $region16: #{_lambda_.1} parent=1 // pred_region
      %33 = vsyncadd [#allocation6], 0
      %s34 = sshll.u32 %s3, 4
      %s35 = int_to_ptr.hbm [resolvable:$true] %s34
      %s36 = sshll.u32 [#allocation5], 4
      %s37 = int_to_ptr.vmem [resolvable:$true] %s36
      %42 = dma.hbm_to_vmem [thread:$0]  %s35, 1024, %s37, [#allocation6], 64, 64, 4
    $region17: #{_lambda_.1} parent=1 // pred_fallthru
      _
    // Predicated region
    $region18: #{_lambda_.1} parent=1 // pred_check
      _
    $region19: #{_lambda_.1} parent=1 // pred_check_branch
      %44 = sbr.rel (0) target = $region21
    $region20: #{_lambda_.1} parent=1 // pred_region
      _
    $region21: #{_lambda_.1} parent=1 // pred_fallthru
      _
    // Predicated region
    $region22: #{_lambda_.1} parent=1 // pred_check
      _
    $region23: #{_lambda_.1} parent=1 // pred_check_branch
      %46 = sbr.rel (0) target = $region25
    $region24: #{_lambda_.1} parent=1 // pred_region
      %48 = dma.done [#allocation3], 256
    $region25: #{_lambda_.1} parent=1 // pred_fallthru
      _
    // Predicated region
    $region26: #{_lambda_.1} parent=1 // pred_check
      _
    $region27: #{_lambda_.1} parent=1 // pred_check_branch
      %50 = sbr.rel (0) target = $region29
    $region28: #{_lambda_.1} parent=1 // pred_region
      %52 = dma.done [#allocation6], 1024
    $region29: #{_lambda_.1} parent=1 // pred_fallthru
      _
    %v54 = vld [vmem:[%s0] sm:$0x1]
    %v55 = vld [vmem:[#allocation2] sm:$0xf]
    %v56 = vld [vmem:[#allocation2 + $0x4] sm:$0xf]
    %v57 = vld [vmem:[#allocation2 + $0x8] sm:$0xf]
    %v58 = vld [vmem:[#allocation2 + $0xc] sm:$0xf]
    %v59 = vld [vmem:[%s2] sm:$0x1]
    %v61 = vperm.slane %v59, 0
    %v67 = vunpack.c.l.b16 %v55
    %v68 = vunpack.c.l.b16 %v56
    %v69 = vunpack.c.l.b16 %v57
    %v70 = vunpack.c.l.b16 %v58
    %v71 = vpack.c.b16 %v68, %v67
    %v72 = vpack.c.b16 %v70, %v69
    %vm75 = vcmask 261120
    %v77 = vsel %vm75, %v54, 0
    %79 = vmatpush.bf16.msra.mxu0 0
    %80 = vmatpush.bf16.msra.mxu0 0
    %81 = vmatpush.bf16.msra.mxu0 0
    %82 = vmatpush.bf16.msra.mxu0 0
    %83 = vmatpush.bf16.msra.mxu0 0
    %84 = vmatpush.bf16.msra.mxu0 0
    %85 = vmatpush.bf16.msra.mxu0 %v72
    %86 = vmatpush.bf16.msra.mxu0 %v71
    %87 = vmatmul.bf16.gmra.mxu0 %v77
    %v88 = vpop.f32.mrf.mxu0
    %v89 = vadd.f32 %v61, %v88
    %v90 = vpop.f32.mrf.mxu0
    %91 = vdwg.mxu0
    %v92 = vmax.f32 %v89, 0.0
    %v93 = vpack.c.bf16 %v92, %v92
    %v94 = vld [vmem:[#allocation5] sm:$0xf]
    %v95 = vld [vmem:[#allocation5 + $0x4] sm:$0xf]
    %v96 = vld [vmem:[#allocation5 + $0x8] sm:$0xf]
    %v97 = vld [vmem:[#allocation5 + $0xc] sm:$0xf]
    %v98 = vld [vmem:[#allocation5 + $0x10] sm:$0xf]
    %v99 = vld [vmem:[#allocation5 + $0x14] sm:$0xf]
    %v100 = vld [vmem:[#allocation5 + $0x18] sm:$0xf]
    %v101 = vld [vmem:[#allocation5 + $0x1c] sm:$0xf]
    %v102 = vld [vmem:[#allocation5 + $0x20] sm:$0xf]
    %v103 = vld [vmem:[#allocation5 + $0x24] sm:$0xf]
    %v104 = vld [vmem:[#allocation5 + $0x28] sm:$0xf]
    %v105 = vld [vmem:[#allocation5 + $0x2c] sm:$0xf]
    %v106 = vld [vmem:[#allocation5 + $0x30] sm:$0xf]
    %v107 = vld [vmem:[#allocation5 + $0x34] sm:$0xf]
    %v108 = vld [vmem:[#allocation5 + $0x38] sm:$0xf]
    %v109 = vld [vmem:[#allocation5 + $0x3c] sm:$0xf]
    %v110 = vld [vmem:[%s4] sm:$0x1]
    %v112 = vperm.slane %v110, 0
    %v130 = vunpack.c.l.b16 %v94
    %v131 = vunpack.c.l.b16 %v95
    %v132 = vunpack.c.l.b16 %v96
    %v133 = vunpack.c.l.b16 %v97
    %v134 = vunpack.c.l.b16 %v98
    %v135 = vunpack.c.l.b16 %v99
    %v136 = vunpack.c.l.b16 %v100
    %v137 = vunpack.c.l.b16 %v101
    %v138 = vunpack.c.l.b16 %v102
    %v139 = vunpack.c.l.b16 %v103
    %v140 = vunpack.c.l.b16 %v104
    %v141 = vunpack.c.l.b16 %v105
    %v142 = vunpack.c.l.b16 %v106
    %v143 = vunpack.c.l.b16 %v107
    %v144 = vunpack.c.l.b16 %v108
    %v145 = vunpack.c.l.b16 %v109
    %v146 = vpack.c.b16 %v131, %v130
    %v147 = vpack.c.b16 %v133, %v132
    %v148 = vpack.c.b16 %v135, %v134
    %v149 = vpack.c.b16 %v137, %v136
    %v150 = vpack.c.b16 %v139, %v138
    %v151 = vpack.c.b16 %v141, %v140
    %v152 = vpack.c.b16 %v143, %v142
    %v153 = vpack.c.b16 %v145, %v144
    %162 = vmatpush.bf16.msra.mxu0 %v153
    %163 = vmatpush.bf16.msra.mxu0 %v152
    %164 = vmatpush.bf16.msra.mxu0 %v151
    %165 = vmatpush.bf16.msra.mxu0 %v150
    %166 = vmatpush.bf16.msra.mxu0 %v149
    %167 = vmatpush.bf16.msra.mxu0 %v148
    %168 = vmatpush.bf16.msra.mxu0 %v147
    %169 = vmatpush.bf16.msra.mxu0 %v146
    %170 = vmatmul.bf16.gmra.mxu0 %v93
    %v171 = vpop.f32.mrf.mxu0
    %v172 = vadd.f32 %v112, %v171
    %v173 = vpop.f32.mrf.mxu0
    %174 = vdwg.mxu0
    %175 = vst [vmem:[#allocation7] sm:$0x3] %v172
    // Predicated region
    $region30: #{_lambda_.1} parent=1 // pred_check
      _
    $region31: #{_lambda_.1} parent=1 // pred_check_branch
      %177 = sbr.rel (0) target = $region33
    $region32: #{_lambda_.1} parent=1 // pred_region
      %179 = vsyncadd [#allocation4], 0
      %s181 = sshll.u32 [#allocation7], 4
      %s182 = int_to_ptr.vmem [resolvable:$true] %s181
      %s183 = sshll.u32 %s5, 4
      %s184 = int_to_ptr.hbm [resolvable:$true] %s183
      %186 = dma.vmem_to_hbm [thread:$0]  %s182, 32, %s184, [#allocation4]
    $region33: #{_lambda_.1} parent=1 // pred_fallthru
      _
    // Predicated region
    $region34: #{_lambda_.1} parent=1 // pred_check
      _
    $region35: #{_lambda_.1} parent=1 // pred_check_branch
      %188 = sbr.rel (0) target = $region37
    $region36: #{_lambda_.1} parent=1 // pred_region
      %190 = dma.done [#allocation4], 32
    $region37: #{_lambda_.1} parent=1 // pred_fallthru
      _
    %191 = vsyncpa [#allocation3], 1
    %192 = vsyncpa [#allocation6], 1
    %193 = vsyncpa [#allocation4], 1

</llo_original>
